<compile_context>
chip_gen: v5e
topology: v5e:2x2
jax: 0.10.0
libtpu: 0.0.40
codegen_flags: <defaults>
</compile_context>

<pallas_src>
import functools

import numpy as np
import jax
import jax.numpy as jnp
from jax.experimental import pallas as pl
from jax.experimental.pallas import tpu as pltpu

LN_EPS = 1e-5
LANES = 128     # fc1 = fc2 = fc3 = 128 in this script; one vreg lane width
MAX_TB = 128    # batch-tile rows per grid step for large batches


def _layernorm(x, gamma, beta):
    # LayerNorm over the last (feature) axis, biased variance, eps=1e-5, f32.
    mean = jnp.mean(x, axis=-1, keepdims=True)
    centered = x - mean
    var = jnp.mean(centered * centered, axis=-1, keepdims=True)
    inv = jax.lax.rsqrt(var + LN_EPS)
    return centered * inv * gamma + beta


def critic_kernel(sa_ref, w1_ref, wm_ref, vec_ref, q_ref, x_scr, *, fc1):
    """Fused Critic forward (one batch tile per grid step).

    sa_ref  : (TB, state_dim + action_dim + 1)  bf16, last column is 1.0
    w1_ref  : (state_dim + action_dim + 1, 2*fc1) bf16 block-diag
              [Ws 0; 0 Wa] with the last row holding [bs | ba]
    wm_ref  : (2*fc1, fc1)                       bf16 merge weight
    vec_ref : (8, 128) packed f32 vectors:
              row 0: gs   row 1: bts  row 2: bm   row 3: gm   row 4: btm
              row 5: wo (fc_out weight row)       row 6: bo broadcast
    q_ref   : (TB, 128) lane-dense f32 output slab (q replicated across lanes)
    x_scr   : (TB, 2*fc1) bf16 VMEM scratch staging the merge-matmul input
    """
    # Single-use broadcasts; hoisted once at kernel entry.  (A stride-0
    # sublane-broadcast load would also work here but is not needed.)
    gs = vec_ref[0:1, :]
    bts = vec_ref[1:2, :]
    bm = vec_ref[2:3, :]
    gm = vec_ref[3:4, :]
    btm = vec_ref[4:5, :]
    wo = vec_ref[5:6, :]
    bo = vec_ref[6:7, :]

    # --- fused first layer: one bf16 MXU pass for both branches + biases ---
    h = jnp.dot(sa_ref[...], w1_ref[...], preferred_element_type=jnp.float32)

    # state half: relu(LN(.)); action half: relu(.)  (no LN, per forward()).
    s_out = jnp.maximum(_layernorm(h[:, :fc1], gs, bts), 0.0)
    a_out = jnp.maximum(h[:, fc1:], 0.0)

    # Stage the two 128-lane-aligned halves in bf16 scratch (no concat) and
    # run the merge layer as a single K=256 bf16 MXU pass.  f32 accumulate,
    # f32 LN / relu afterwards.
    x_scr[:, :fc1] = s_out.astype(x_scr.dtype)
    x_scr[:, fc1:] = a_out.astype(x_scr.dtype)
    m_pre = jnp.dot(x_scr[...], wm_ref[...],
                    preferred_element_type=jnp.float32) + bm
    m_out = jnp.maximum(_layernorm(m_pre, gm, btm), 0.0)

    # --- output head on VPU + XLU (no N=1 MXU matmul) ---
    # (TB,1) lane reduce + (1,128) bo row -> lane-dense (TB,128) slab.
    q_ref[...] = jnp.sum(m_out * wo, axis=-1, keepdims=True) + bo


def critic_forward(state, action, kp, *, fc1=LANES):
    if fc1 != LANES:
        raise ValueError("critic_kernel packing assumes fc1=fc2=fc3=128")
    B = state.shape[0]
    k1 = state.shape[1] + action.shape[1] + 1
    assert kp["W1"].shape == (k1, 2 * fc1)
    assert kp["Wm"].shape == (2 * fc1, fc1)
    assert kp["vec"].shape == (8, LANES)

    # TODO(synk): for single-call latency-critical inference, take state and
    # action as two kernel refs so this wrapper-side concat HLO disappears.
    ones = jnp.ones((B, 1), jnp.float32)
    sa = jnp.concatenate([state, action, ones], axis=1).astype(jnp.bfloat16)

    if B <= MAX_TB:
        tb, pb = B, B
    else:
        tb = MAX_TB
        pb = tb * ((B + tb - 1) // tb)
        if pb != B:
            sa = jnp.pad(sa, ((0, pb - B), (0, 0)))
    grid = (pb // tb,)

    flops = int(2 * pb * (k1 * 2 * fc1 + 2 * fc1 * fc1 + fc1))
    bytes_accessed = int(
        2 * sa.size + 2 * kp["W1"].size + 2 * kp["Wm"].size
        + 4 * kp["vec"].size + 4 * pb * LANES
    )

    q_slab = pl.pallas_call(
        functools.partial(critic_kernel, fc1=fc1),
        out_shape=jax.ShapeDtypeStruct((pb, LANES), jnp.float32),
        grid=grid,
        in_specs=[
            pl.BlockSpec((tb, k1), lambda i: (i, 0)),            # sa tile
            pl.BlockSpec((k1, 2 * fc1), lambda i: (0, 0)),       # W1 resident
            pl.BlockSpec((2 * fc1, fc1), lambda i: (0, 0)),      # Wm resident
            pl.BlockSpec((8, LANES), lambda i: (0, 0)),          # vec resident
        ],
        out_specs=pl.BlockSpec((tb, LANES), lambda i: (i, 0)),
        scratch_shapes=[pltpu.VMEM((tb, 2 * fc1), jnp.bfloat16)],
        compiler_params=pltpu.CompilerParams(
            dimension_semantics=("parallel",)),                   # v7x: 2 TCs
        cost_estimate=pl.CostEstimate(
            flops=flops, transcendentals=2 * pb, bytes_accessed=bytes_accessed
        ),
    )(sa, kp["W1"], kp["Wm"], kp["vec"])

    # Lane-dense slab; the q-value lives in (every) lane.  Drop pad rows.
    return q_slab[:B, :1]


def init_params(key, state_dim, action_dim, fc1, fc2, fc3):
    """Deterministic synthetic init mirroring Critic.reset_parameters weight
    bounds.  Biases / LN affine params get small nonzero values (PyTorch
    zeros them) so the correctness check exercises every packed row."""
    ks = jax.random.split(key, 12)

    def fanin_uniform(k, out_f, in_f):
        # PyTorch fanin_uniform uses weight.size(0) == out_features as "fan_in".
        bound = 1.0 / np.sqrt(out_f)
        w = jax.random.uniform(k, (out_f, in_f), jnp.float32, -bound, bound)
        return w.T  # stored as (in, out) for x @ W

    u = lambda k, n, lo, hi: jax.random.uniform(k, (n,), jnp.float32, lo, hi)

    p = {}
    p["Ws"] = fanin_uniform(ks[0], fc1, state_dim)          # (state_dim, fc1)
    p["bs"] = u(ks[1], fc1, -0.1, 0.1)
    p["gs"] = u(ks[2], fc1, 0.9, 1.1)                       # state_ln weight
    p["bts"] = u(ks[3], fc1, -0.1, 0.1)                     # state_ln bias

    p["Wa"] = fanin_uniform(ks[4], fc2, action_dim)         # (action_dim, fc2)
    p["ba"] = u(ks[5], fc2, -0.1, 0.1)

    p["Wm"] = fanin_uniform(ks[6], fc3, fc1 + fc2)          # (fc1+fc2, fc3)
    p["bm"] = u(ks[7], fc3, -0.1, 0.1)
    p["gm"] = u(ks[8], fc3, 0.9, 1.1)                       # merge_ln weight
    p["btm"] = u(ks[9], fc3, -0.1, 0.1)                     # merge_ln bias

    p["Wo"] = jax.random.uniform(ks[10], (1, fc3), jnp.float32, -0.003, 0.003).T
    p["bo"] = u(ks[11], 1, -0.003, 0.003)
    return p


def pack_params(p, *, state_dim, action_dim, fc1, fc2, fc3):
    """Build kernel-layout params.  W1/Wm are cast to bf16 (MXU operands);
    everything elementwise stays f32 in the packed vec slab."""
    assert fc1 == LANES and fc2 == LANES and fc3 == LANES, \
        "packing assumes 128-wide layers"

    # Block-diagonal fused first-layer weight with folded biases:
    #   [state | action | 1] @ W1 == [state@Ws + bs | action@Wa + ba]
    w1 = jnp.zeros((state_dim + action_dim + 1, fc1 + fc2), jnp.float32)
    w1 = w1.at[:state_dim, :fc1].set(p["Ws"])
    w1 = w1.at[state_dim:state_dim + action_dim, fc1:].set(p["Wa"])
    w1 = w1.at[-1, :fc1].set(p["bs"])
    w1 = w1.at[-1, fc1:].set(p["ba"])

    rows = jnp.stack(
        [
            p["gs"], p["bts"],
            p["bm"], p["gm"], p["btm"],
            p["Wo"][:, 0],                                   # fc_out weight row
            jnp.full((LANES,), p["bo"][0], jnp.float32),     # bo broadcast
        ]
    )
    vec = jnp.zeros((8, LANES), jnp.float32).at[: rows.shape[0], :].set(rows)

    return {"W1": w1.astype(jnp.bfloat16),
            "Wm": p["Wm"].astype(jnp.bfloat16),
            "vec": vec}


def critic_reference(state, action, p):
    """Pure-JAX f32 reference, literal transcription of Critic.forward."""

    def ln(x, g, b):
        mu = x.mean(-1, keepdims=True)
        v = ((x - mu) ** 2).mean(-1, keepdims=True)
        return (x - mu) / jnp.sqrt(v + LN_EPS) * g + b

    s = jax.nn.relu(ln(state @ p["Ws"] + p["bs"], p["gs"], p["bts"]))
    a = jax.nn.relu(action @ p["Wa"] + p["ba"])
    x = jnp.concatenate([s, a], axis=1)
    x = jax.nn.relu(ln(x @ p["Wm"] + p["bm"], p["gm"], p["btm"]))
    return x @ p["Wo"] + p["bo"]


def critic_reference_bf16(state, action, p):
    """Quantization-aware reference: rounds the same quantities the kernel
    rounds through bf16 (inputs, W1 block weights + folded first-layer biases,
    merge-matmul activations, Wm); all other math f32."""
    bf = lambda t: t.astype(jnp.bfloat16).astype(jnp.float32)

    def ln(x, g, b):
        mu = x.mean(-1, keepdims=True)
        v = ((x - mu) ** 2).mean(-1, keepdims=True)
        return (x - mu) / jnp.sqrt(v + LN_EPS) * g + b

    s = jax.nn.relu(ln(bf(state) @ bf(p["Ws"]) + bf(p["bs"]),
                       p["gs"], p["bts"]))
    a = jax.nn.relu(bf(action) @ bf(p["Wa"]) + bf(p["ba"]))
    x = bf(jnp.concatenate([s, a], axis=1))
    x = jax.nn.relu(ln(x @ bf(p["Wm"]) + p["bm"], p["gm"], p["btm"]))
    return x @ p["Wo"] + p["bo"]


if __name__ == "__main__":
    B, STATE_DIM, ACTION_DIM = 8, 16, 4
    FC1 = FC2 = FC3 = 128

    key = jax.random.PRNGKey(0)
    k_state, k_action, k_params = jax.random.split(key, 3)

    state = jax.random.normal(k_state, (B, STATE_DIM), jnp.float32)
    action = jax.random.normal(k_action, (B, ACTION_DIM), jnp.float32)

    raw_params = init_params(k_params, STATE_DIM, ACTION_DIM, FC1, FC2, FC3)
    kernel_params = pack_params(
        raw_params, state_dim=STATE_DIM, action_dim=ACTION_DIM,
        fc1=FC1, fc2=FC2, fc3=FC3,
    )

    q = critic_forward(state, action, kernel_params, fc1=FC1)
    q = jax.block_until_ready(q)
    assert q.shape == (B, 1)

    # Tight check against a reference that applies the identical bf16 rounding
    # of MXU operands (remaining deltas: rsqrt vs sqrt-div, accumulation order).
    q_bf16_ref = critic_reference_bf16(state, action, raw_params)
    np.testing.assert_allclose(np.asarray(q), np.asarray(q_bf16_ref),
                               rtol=1e-3, atol=5e-5)

    # Loose check against the exact f32 transcription of Critic.forward
    # (bf16 weight/input rounding is the only systematic difference).
    q_f32_ref = critic_reference(state, action, raw_params)
    np.testing.assert_allclose(np.asarray(q), np.asarray(q_f32_ref),
                               rtol=5e-2, atol=1e-3)

    print("KERNEL_OK")
</pallas_src>

<mosaic_0001>
module attributes {stable_mosaic.version = 11 : i64} {
  func.func @critic_kernel(%arg0: i32, %arg1: memref<8x21xbf16, #tpu.memory_space<vmem>>, %arg2: memref<21x256xbf16, #tpu.memory_space<vmem>>, %arg3: memref<256x128xbf16, #tpu.memory_space<vmem>>, %arg4: memref<8x128xf32, #tpu.memory_space<vmem>>, %arg5: memref<8x128xf32, #tpu.memory_space<vmem>>, %arg6: memref<8x256xbf16, #tpu.memory_space<vmem>>) attributes {dimension_semantics = [#tpu.dimension_semantics<parallel>], iteration_bounds = array<i64: 1>, scalar_prefetch = 0 : i64, scratch_operands = 1 : i64, tpu.core_type = #tpu.core_type<tc>, window_params = [{transform_indices = @transform_0, window_bounds = array<i64: 8, 21>}, {pipeline_mode = #tpu.pipeline_mode<synchronous>, transform_indices = @transform_1, window_bounds = array<i64: 21, 256>}, {pipeline_mode = #tpu.pipeline_mode<synchronous>, transform_indices = @transform_2, window_bounds = array<i64: 256, 128>}, {pipeline_mode = #tpu.pipeline_mode<synchronous>, transform_indices = @transform_3, window_bounds = array<i64: 8, 128>}, {transform_indices = @transform_4, window_bounds = array<i64: 8, 128>}]} {
    %c0 = arith.constant 0 : index
    %c0_0 = arith.constant 0 : index
    %0 = vector.load %arg4[%c0, %c0_0] : memref<8x128xf32, #tpu.memory_space<vmem>>, vector<1x128xf32>
    %c1 = arith.constant 1 : index
    %c0_1 = arith.constant 0 : index
    %1 = vector.load %arg4[%c1, %c0_1] : memref<8x128xf32, #tpu.memory_space<vmem>>, vector<1x128xf32>
    %c2 = arith.constant 2 : index
    %c0_2 = arith.constant 0 : index
    %2 = vector.load %arg4[%c2, %c0_2] : memref<8x128xf32, #tpu.memory_space<vmem>>, vector<1x128xf32>
    %c3 = arith.constant 3 : index
    %c0_3 = arith.constant 0 : index
    %3 = vector.load %arg4[%c3, %c0_3] : memref<8x128xf32, #tpu.memory_space<vmem>>, vector<1x128xf32>
    %c4 = arith.constant 4 : index
    %c0_4 = arith.constant 0 : index
    %4 = vector.load %arg4[%c4, %c0_4] : memref<8x128xf32, #tpu.memory_space<vmem>>, vector<1x128xf32>
    %c5 = arith.constant 5 : index
    %c0_5 = arith.constant 0 : index
    %5 = vector.load %arg4[%c5, %c0_5] : memref<8x128xf32, #tpu.memory_space<vmem>>, vector<1x128xf32>
    %c6 = arith.constant 6 : index
    %c0_6 = arith.constant 0 : index
    %6 = vector.load %arg4[%c6, %c0_6] : memref<8x128xf32, #tpu.memory_space<vmem>>, vector<1x128xf32>
    %c0_7 = arith.constant 0 : index
    %c0_8 = arith.constant 0 : index
    %7 = vector.load %arg1[%c0_7, %c0_8] : memref<8x21xbf16, #tpu.memory_space<vmem>>, vector<8x21xbf16>
    %c0_9 = arith.constant 0 : index
    %c0_10 = arith.constant 0 : index
    %8 = vector.load %arg2[%c0_9, %c0_10] : memref<21x256xbf16, #tpu.memory_space<vmem>>, vector<21x256xbf16>
    %cst = arith.constant dense<0.000000e+00> : vector<8x256xf32>
    %9 = tpu.matmul %7, %8, %cst {dimension_numbers = #tpu.dot_dimension_numbers<[1], [0], [0], [1], [0, 0, 1, 1], [], []>} : vector<8x21xbf16>, vector<21x256xbf16>, vector<8x256xf32> -> vector<8x256xf32>
    %10 = vector.extract_strided_slice %9 {offsets = [0, 0], sizes = [8, 128], strides = [1, 1]} : vector<8x256xf32> to vector<8x128xf32>
    %cst_11 = arith.constant dense<0.000000e+00> : vector<8xf32>
    %11 = vector.multi_reduction <add>, %10, %cst_11 [1] : vector<8x128xf32> to vector<8xf32>
    %12 = vector.shape_cast %11 : vector<8xf32> to vector<8x1xf32>
    %cst_12 = arith.constant 1.280000e+02 : f32
    %13 = vector.broadcast %cst_12 : f32 to vector<8x1xf32>
    %14 = arith.divf %12, %13 : vector<8x1xf32>
    %15 = vector.broadcast %14 : vector<8x1xf32> to vector<8x128xf32>
    %16 = arith.subf %10, %15 : vector<8x128xf32>
    %17 = arith.mulf %16, %16 : vector<8x128xf32>
    %cst_13 = arith.constant dense<0.000000e+00> : vector<8xf32>
    %18 = vector.multi_reduction <add>, %17, %cst_13 [1] : vector<8x128xf32> to vector<8xf32>
    %19 = vector.shape_cast %18 : vector<8xf32> to vector<8x1xf32>
    %cst_14 = arith.constant 1.280000e+02 : f32
    %20 = vector.broadcast %cst_14 : f32 to vector<8x1xf32>
    %21 = arith.divf %19, %20 : vector<8x1xf32>
    %cst_15 = arith.constant 9.99999974E-6 : f32
    %22 = vector.broadcast %cst_15 : f32 to vector<8x1xf32>
    %23 = arith.addf %21, %22 : vector<8x1xf32>
    %24 = math.rsqrt %23 : vector<8x1xf32>
    %25 = vector.broadcast %24 : vector<8x1xf32> to vector<8x128xf32>
    %26 = arith.mulf %16, %25 : vector<8x128xf32>
    %27 = vector.broadcast %0 : vector<1x128xf32> to vector<8x128xf32>
    %28 = arith.mulf %26, %27 : vector<8x128xf32>
    %29 = vector.broadcast %1 : vector<1x128xf32> to vector<8x128xf32>
    %30 = arith.addf %28, %29 : vector<8x128xf32>
    %cst_16 = arith.constant 0.000000e+00 : f32
    %31 = vector.broadcast %cst_16 : f32 to vector<8x128xf32>
    %32 = arith.maximumf %30, %31 : vector<8x128xf32>
    %33 = vector.extract_strided_slice %9 {offsets = [0, 128], sizes = [8, 128], strides = [1, 1]} : vector<8x256xf32> to vector<8x128xf32>
    %cst_17 = arith.constant 0.000000e+00 : f32
    %34 = vector.broadcast %cst_17 : f32 to vector<8x128xf32>
    %35 = arith.maximumf %33, %34 : vector<8x128xf32>
    %36 = arith.truncf %32 : vector<8x128xf32> to vector<8x128xbf16>
    %c0_18 = arith.constant 0 : index
    %c0_19 = arith.constant 0 : index
    %37 = vector.load %arg6[%c0_18, %c0_19] : memref<8x256xbf16, #tpu.memory_space<vmem>>, vector<8x128xbf16>
    tpu.vector_store %arg6[%c0_18, %c0_19], %36 {strides = array<i32>} : memref<8x256xbf16, #tpu.memory_space<vmem>>, vector<8x128xbf16>,
    %38 = arith.truncf %35 : vector<8x128xf32> to vector<8x128xbf16>
    %c0_20 = arith.constant 0 : index
    %c128 = arith.constant 128 : index
    %39 = vector.load %arg6[%c0_20, %c128] : memref<8x256xbf16, #tpu.memory_space<vmem>>, vector<8x128xbf16>
    tpu.vector_store %arg6[%c0_20, %c128], %38 {strides = array<i32>} : memref<8x256xbf16, #tpu.memory_space<vmem>>, vector<8x128xbf16>,
    %c0_21 = arith.constant 0 : index
    %c0_22 = arith.constant 0 : index
    %40 = vector.load %arg6[%c0_21, %c0_22] : memref<8x256xbf16, #tpu.memory_space<vmem>>, vector<8x256xbf16>
    %c0_23 = arith.constant 0 : index
    %c0_24 = arith.constant 0 : index
    %41 = vector.load %arg3[%c0_23, %c0_24] : memref<256x128xbf16, #tpu.memory_space<vmem>>, vector<256x128xbf16>
    %cst_25 = arith.constant dense<0.000000e+00> : vector<8x128xf32>
    %42 = tpu.matmul %40, %41, %cst_25 {dimension_numbers = #tpu.dot_dimension_numbers<[1], [0], [0], [1], [0, 0, 1, 1], [], []>} : vector<8x256xbf16>, vector<256x128xbf16>, vector<8x128xf32> -> vector<8x128xf32>
    %43 = vector.broadcast %2 : vector<1x128xf32> to vector<8x128xf32>
    %44 = arith.addf %42, %43 : vector<8x128xf32>
    %cst_26 = arith.constant dense<0.000000e+00> : vector<8xf32>
    %45 = vector.multi_reduction <add>, %44, %cst_26 [1] : vector<8x128xf32> to vector<8xf32>
    %46 = vector.shape_cast %45 : vector<8xf32> to vector<8x1xf32>
    %cst_27 = arith.constant 1.280000e+02 : f32
    %47 = vector.broadcast %cst_27 : f32 to vector<8x1xf32>
    %48 = arith.divf %46, %47 : vector<8x1xf32>
    %49 = vector.broadcast %48 : vector<8x1xf32> to vector<8x128xf32>
    %50 = arith.subf %44, %49 : vector<8x128xf32>
    %51 = arith.mulf %50, %50 : vector<8x128xf32>
    %cst_28 = arith.constant dense<0.000000e+00> : vector<8xf32>
    %52 = vector.multi_reduction <add>, %51, %cst_28 [1] : vector<8x128xf32> to vector<8xf32>
    %53 = vector.shape_cast %52 : vector<8xf32> to vector<8x1xf32>
    %cst_29 = arith.constant 1.280000e+02 : f32
    %54 = vector.broadcast %cst_29 : f32 to vector<8x1xf32>
    %55 = arith.divf %53, %54 : vector<8x1xf32>
    %cst_30 = arith.constant 9.99999974E-6 : f32
    %56 = vector.broadcast %cst_30 : f32 to vector<8x1xf32>
    %57 = arith.addf %55, %56 : vector<8x1xf32>
    %58 = math.rsqrt %57 : vector<8x1xf32>
    %59 = vector.broadcast %58 : vector<8x1xf32> to vector<8x128xf32>
    %60 = arith.mulf %50, %59 : vector<8x128xf32>
    %61 = vector.broadcast %3 : vector<1x128xf32> to vector<8x128xf32>
    %62 = arith.mulf %60, %61 : vector<8x128xf32>
    %63 = vector.broadcast %4 : vector<1x128xf32> to vector<8x128xf32>
    %64 = arith.addf %62, %63 : vector<8x128xf32>
    %cst_31 = arith.constant 0.000000e+00 : f32
    %65 = vector.broadcast %cst_31 : f32 to vector<8x128xf32>
    %66 = arith.maximumf %64, %65 : vector<8x128xf32>
    %67 = vector.broadcast %5 : vector<1x128xf32> to vector<8x128xf32>
    %68 = arith.mulf %66, %67 : vector<8x128xf32>
    %cst_32 = arith.constant dense<0.000000e+00> : vector<8xf32>
    %69 = vector.multi_reduction <add>, %68, %cst_32 [1] : vector<8x128xf32> to vector<8xf32>
    %70 = vector.shape_cast %69 : vector<8xf32> to vector<8x1xf32>
    %71 = vector.broadcast %70 : vector<8x1xf32> to vector<8x128xf32>
    %72 = vector.broadcast %6 : vector<1x128xf32> to vector<8x128xf32>
    %73 = arith.addf %71, %72 : vector<8x128xf32>
    %c0_33 = arith.constant 0 : index
    %c0_34 = arith.constant 0 : index
    %74 = vector.load %arg5[%c0_33, %c0_34] : memref<8x128xf32, #tpu.memory_space<vmem>>, vector<8x128xf32>
    tpu.vector_store %arg5[%c0_33, %c0_34], %73 {strides = array<i32>} : memref<8x128xf32, #tpu.memory_space<vmem>>, vector<8x128xf32>,
    return
  }
  func.func @transform_0(%arg0: i32) -> (i32, i32) {
    %c0_i32 = arith.constant 0 : i32
    %c0_i32_0 = arith.constant 0 : i32
    return %arg0, %c0_i32 : i32, i32
  }
  func.func @transform_1(%arg0: i32) -> (i32, i32) {
    %c0_i32 = arith.constant 0 : i32
    %c0_i32_0 = arith.constant 0 : i32
    %c0_i32_1 = arith.constant 0 : i32
    return %c0_i32, %c0_i32_0 : i32, i32
  }
  func.func @transform_2(%arg0: i32) -> (i32, i32) {
    %c0_i32 = arith.constant 0 : i32
    %c0_i32_0 = arith.constant 0 : i32
    %c0_i32_1 = arith.constant 0 : i32
    return %c0_i32, %c0_i32_0 : i32, i32
  }
  func.func @transform_3(%arg0: i32) -> (i32, i32) {
    %c0_i32 = arith.constant 0 : i32
    %c0_i32_0 = arith.constant 0 : i32
    %c0_i32_1 = arith.constant 0 : i32
    return %c0_i32, %c0_i32_0 : i32, i32
  }
  func.func @transform_4(%arg0: i32) -> (i32, i32) {
    %c0_i32 = arith.constant 0 : i32
    %c0_i32_0 = arith.constant 0 : i32
    return %arg0, %c0_i32 : i32, i32
  }
}

</mosaic_0001>

<llo_original>
// kernel: tpu_custom_call.1
$region0: #{tpu_custom_call.1}
  #allocation0 [shape = 'u32[]', space=smem, size = 0x4, offset = 0x4, fixed_abs, tag = 'smem constant byte address 0x4 - core index']
  #allocation1 [shape = 'u32[72,128]{1,0:T(1,128)}', space=vmem, size = 0x9000, scoped, tag = 'internal scratch']
  #allocation2 [shape = 'bf16[8,256]{1,0:T(8,128)(2,1)}', space=vmem, size = 0x1000, scoped, tag = 'scratch operand']
  %s0 = inlined_call_operand.hbm [shape: bf16[8,21], index: 0, kind: input, shape index: {}]
  %s1 = inlined_call_operand.hbm [shape: bf16[21,256], index: 1, kind: input, shape index: {}]
  %s2 = inlined_call_operand.hbm [shape: bf16[256,128], index: 2, kind: input, shape index: {}]
  %s3 = inlined_call_operand.hbm [shape: f32[8,128], index: 3, kind: input, shape index: {}]
  %s4 = inlined_call_operand.hbm [shape: f32[8,128], index: 4, kind: output, shape index: {}]
  %s5 = sld [smem:[#allocation0]]
  $region42: #{tpu_custom_call.1} parent=0
    _
  %s7 = ssub.s32 1, %s5
  %s8 = scalar_select 0, %s7, %s5
  $region1: #{tpu_custom_call.1} parent=0
    #allocation3 [shape = 'u8[2048]{0}', space=vmem, size = 0x800, scoped, tag = 'input window, operand 0, single buffered']
    #allocation4 [shape = 's32[1]{0}', space=sflag, size = 0x4, scoped, tag = 'scoped memory for tpu_custom_call.1']
    #allocation5 [shape = 's32[1]{0}', space=sflag, size = 0x4, scoped, tag = 'scoped memory for tpu_custom_call.1']
    #allocation6 [shape = 'u8[12288]{0}', space=vmem, size = 0x3000, scoped, tag = 'input window, operand 1, single buffered']
    #allocation7 [shape = 's32[1]{0}', space=sflag, size = 0x4, scoped, tag = 'scoped memory for tpu_custom_call.1']
    #allocation8 [shape = 'u8[65536]{0}', space=vmem, size = 0x10000, scoped, tag = 'input window, operand 2, single buffered']
    #allocation9 [shape = 'u8[4096]{0}', space=vmem, size = 0x1000, scoped, tag = 'input window, operand 3, single buffered']
    #allocation10 [shape = 's32[1]{0}', space=sflag, size = 0x4, scoped, tag = 'scoped memory for tpu_custom_call.1']
    #allocation11 [shape = 'u8[4096]{0}', space=vmem, size = 0x1000, scoped, tag = 'output window, operand 0, single buffered']
    %9 = vsyncpa [#allocation4], 0
    %10 = vsyncpa [#allocation7], 0
    %11 = vsyncpa [#allocation10], 0
    %12 = vsyncpa [#allocation5], 0
    // Predicated region
    $region2: #{tpu_custom_call.1} parent=1 // pred_check
      _
    $region3: #{tpu_custom_call.1} parent=1 // pred_check_branch
      %14 = sbr.rel (0) target = $region5
    $region4: #{tpu_custom_call.1} parent=1 // pred_region
      %16 = vsyncadd [#allocation4], 0
      %s18 = sshll.u32 %s0, 4
      %s19 = int_to_ptr.hbm [resolvable:$true] %s18
      %s20 = sshll.u32 [#allocation3], 4
      %s21 = int_to_ptr.vmem [resolvable:$true] %s20
      %23 = dma.hbm_to_vmem [thread:$0]  %s19, 64, %s21, [#allocation4]
    $region5: #{tpu_custom_call.1} parent=1 // pred_fallthru
      _
    // Predicated region
    $region6: #{tpu_custom_call.1} parent=1 // pred_check
      _
    $region7: #{tpu_custom_call.1} parent=1 // pred_check_branch
      %25 = sbr.rel (0) target = $region9
    $region8: #{tpu_custom_call.1} parent=1 // pred_region
      %27 = vsyncadd [#allocation7], 0
      %s28 = sshll.u32 %s1, 4
      %s29 = int_to_ptr.hbm [resolvable:$true] %s28
      %s30 = sshll.u32 [#allocation6], 4
      %s31 = int_to_ptr.vmem [resolvable:$true] %s30
      %36 = dma.hbm_to_vmem [thread:$0]  %s29, 384, %s31, [#allocation7], 128, 128, 8
    $region9: #{tpu_custom_call.1} parent=1 // pred_fallthru
      _
    // Predicated region
    $region10: #{tpu_custom_call.1} parent=1 // pred_check
      _
    $region11: #{tpu_custom_call.1} parent=1 // pred_check_branch
      %38 = sbr.rel (0) target = $region13
    $region12: #{tpu_custom_call.1} parent=1 // pred_region
      %40 = vsyncadd [#allocation7], 0
      %s41 = sshll.u32 %s2, 4
      %s42 = int_to_ptr.hbm [resolvable:$true] %s41
      %s43 = sshll.u32 [#allocation8], 4
      %s44 = int_to_ptr.vmem [resolvable:$true] %s43
      %49 = dma.hbm_to_vmem [thread:$0]  %s42, 2048, %s44, [#allocation7], 64, 64, 4
    $region13: #{tpu_custom_call.1} parent=1 // pred_fallthru
      _
    // Predicated region
    $region14: #{tpu_custom_call.1} parent=1 // pred_check
      _
    $region15: #{tpu_custom_call.1} parent=1 // pred_check_branch
      %51 = sbr.rel (0) target = $region17
    $region16: #{tpu_custom_call.1} parent=1 // pred_region
      %53 = vsyncadd [#allocation10], 0
      %s55 = sshll.u32 %s3, 4
      %s56 = int_to_ptr.hbm [resolvable:$true] %s55
      %s57 = sshll.u32 [#allocation9], 4
      %s58 = int_to_ptr.vmem [resolvable:$true] %s57
      %60 = dma.hbm_to_vmem [thread:$0]  %s56, 128, %s58, [#allocation10]
    $region17: #{tpu_custom_call.1} parent=1 // pred_fallthru
      _
    // Predicated region
    $region18: #{tpu_custom_call.1} parent=1 // pred_check
      _
    $region19: #{tpu_custom_call.1} parent=1 // pred_check_branch
      %62 = sbr.rel (0) target = $region21
    $region20: #{tpu_custom_call.1} parent=1 // pred_region
      %64 = dma.done [#allocation4], 64
    $region21: #{tpu_custom_call.1} parent=1 // pred_fallthru
      _
    // Predicated region
    $region22: #{tpu_custom_call.1} parent=1 // pred_check
      _
    $region23: #{tpu_custom_call.1} parent=1 // pred_check_branch
      %66 = sbr.rel (0) target = $region25
    $region24: #{tpu_custom_call.1} parent=1 // pred_region
      %68 = dma.done [#allocation7], 384
    $region25: #{tpu_custom_call.1} parent=1 // pred_fallthru
      _
    // Predicated region
    $region26: #{tpu_custom_call.1} parent=1 // pred_check
      _
    $region27: #{tpu_custom_call.1} parent=1 // pred_check_branch
      %70 = sbr.rel (0) target = $region29
    $region28: #{tpu_custom_call.1} parent=1 // pred_region
      %72 = dma.done [#allocation7], 2048
    $region29: #{tpu_custom_call.1} parent=1 // pred_fallthru
      _
    // Predicated region
    $region30: #{tpu_custom_call.1} parent=1 // pred_check
      _
    $region31: #{tpu_custom_call.1} parent=1 // pred_check_branch
      %74 = sbr.rel (0) target = $region33
    $region32: #{tpu_custom_call.1} parent=1 // pred_region
      %76 = dma.done [#allocation10], 128
    $region33: #{tpu_custom_call.1} parent=1 // pred_fallthru
      _
    %v78 = vld [vmem:[#allocation9] sm:$0x1]
    %v79 = vld [vmem:[#allocation9 + $0x1] sm:$0x1]
    %v80 = vld [vmem:[#allocation9 + $0x2] sm:$0x1]
    %v81 = vld [vmem:[#allocation9 + $0x3] sm:$0x1]
    %v82 = vld [vmem:[#allocation9 + $0x4] sm:$0x1]
    %v83 = vld [vmem:[#allocation9 + $0x5] sm:$0x1]
    %v84 = vld [vmem:[#allocation9 + $0x6] sm:$0x1]
    %v85 = vld [vmem:[#allocation3] sm:$0xf]
    %v86 = vld [vmem:[#allocation6] sm:$0xff]
    %v87 = vld [vmem:[#allocation6 + $0x8] sm:$0xff]
    %v88 = vld [vmem:[#allocation6 + $0x10] sm:$0x77]
    %v92 = vunpack.c.l.b16 %v86
    %v93 = vunpack.c.h.b16 %v86
    %v94 = vunpack.c.l.b16 %v87
    %v95 = vunpack.c.h.b16 %v87
    %v96 = vunpack.c.l.b16 %v88
    %v97 = vunpack.c.h.b16 %v88
    %v98 = vpack.c.b16 %v94, %v92
    %v99 = vpack.c.b16 %v95, %v93
    %v100 = vpack.c.b16 %v96, %v96
    %v101 = vpack.c.b16 %v97, %v97
    %vm104 = vcmask 171008
    %v106 = vsel %vm104, %v85, 0
    %vm108 = vcmask 1041408
    %vm109 = vcmask 1042432
    %v110 = vsel %vm108, 4294967295, 65535
    %v111 = vsel %vm109, %v110, 0
    %v113 = vand.u32 %v100, %v111
    %v116 = vand.u32 %v101, %v111
    %118 = vmatpush.bf16.msra.mxu0 0
    %119 = vmatpush.bf16.msra.mxu0 0
    %120 = vmatpush.bf16.msra.mxu0 0
    %121 = vmatpush.bf16.msra.mxu0 0
    %122 = vmatpush.bf16.msra.mxu0 0
    %123 = vmatpush.bf16.msra.mxu0 0
    %124 = vmatpush.bf16.msra.mxu0 %v113
    %125 = vmatpush.bf16.msra.mxu0 %v98
    %126 = vmatmul.bf16.gmra.mxu0 %v106
    %v127 = vpop.f32.mrf.mxu0
    %v128 = vadd.f32 0.0, %v127
    %v129 = vpop.f32.mrf.mxu0
    %130 = vdwg.mxu0
    %131 = vmatpush.bf16.msra.mxu0 0
    %132 = vmatpush.bf16.msra.mxu0 0
    %133 = vmatpush.bf16.msra.mxu0 0
    %134 = vmatpush.bf16.msra.mxu0 0
    %135 = vmatpush.bf16.msra.mxu0 0
    %136 = vmatpush.bf16.msra.mxu0 0
    %137 = vmatpush.bf16.msra.mxu0 %v116
    %138 = vmatpush.bf16.msra.mxu0 %v99
    %139 = vmatmul.bf16.gmra.mxu0 %v106
    %v140 = vpop.f32.mrf.mxu0
    %v141 = vadd.f32 0.0, %v140
    %v142 = vpop.f32.mrf.mxu0
    %143 = vdwg.mxu0
    %144 = vadd.xlane.f32.xlu0 %v128
    %v145 = vpop.xlane.xlu0 %144
    %v146 = vrcp.pop 128.0
    %v147 = vmul.f32 128.0, %v146
    %v148 = vsub.f32 1.0, %v147
    %v149 = vmul.f32 %v146, %v148
    %v150 = vadd.f32 %v146, %v149
    %vm151 = vweird.f32 %v146
    %v152 = vsel %vm151, %v146, %v150
    %v153 = vmul.f32 %v145, %v152
    %v154 = vsub.f32 %v128, %v153
    %v155 = vmul.f32 %v154, %v154
    %156 = vadd.xlane.f32.xlu0 %v155
    %v157 = vpop.xlane.xlu0 %156
    %v158 = vmul.f32 %v157, %v152
    %v159 = vadd.f32 %v158, 1e-05
    %v160 = vrsqrt.pop %v159
    %v161 = vmul.f32 %v160, %v159
    %v162 = vmul.f32 %v161, %v160
    %v163 = vmul.f32 0.5, %v162
    %v164 = vsub.f32 1.5, %v163
    %v165 = vmul.f32 %v160, %v164
    %vm166 = vweird.f32 %v159
    %vm167 = vweird.f32 %v160
    %vm168 = vmor %vm166, %vm167
    %v169 = vsel %vm168, %v160, %v165
    %v170 = vmul.f32 %v154, %v169
    %v171 = vperm.slane %v78, 0
    %v172 = vmul.f32 %v170, %v171
    %v173 = vperm.slane %v79, 0
    %v174 = vadd.f32 %v172, %v173
    %v175 = vmax.f32 %v174, 0.0
    %v176 = vmax.f32 %v141, 0.0
    %v177 = vpack.c.bf16 %v175, %v175
    %178 = vst [vmem:[#allocation2] sm:$0xf] %v177
    %v179 = vpack.c.bf16 %v176, %v176
    %180 = vst [vmem:[#allocation2 + $0x4] sm:$0xf] %v179
    %v181 = vld [vmem:[#allocation2] sm:$0xff]
    %v182 = vld [vmem:[#allocation8] sm:$0xf]
    %v183 = vld [vmem:[#allocation8 + $0x4] sm:$0xf]
    %v184 = vld [vmem:[#allocation8 + $0x8] sm:$0xf]
    %v185 = vld [vmem:[#allocation8 + $0xc] sm:$0xf]
    %v186 = vld [vmem:[#allocation8 + $0x10] sm:$0xf]
    %v187 = vld [vmem:[#allocation8 + $0x14] sm:$0xf]
    %v188 = vld [vmem:[#allocation8 + $0x18] sm:$0xf]
    %v189 = vld [vmem:[#allocation8 + $0x1c] sm:$0xf]
    %v190 = vld [vmem:[#allocation8 + $0x20] sm:$0xf]
    %v191 = vld [vmem:[#allocation8 + $0x24] sm:$0xf]
    %v192 = vld [vmem:[#allocation8 + $0x28] sm:$0xf]
    %v193 = vld [vmem:[#allocation8 + $0x2c] sm:$0xf]
    %v194 = vld [vmem:[#allocation8 + $0x30] sm:$0xf]
    %v195 = vld [vmem:[#allocation8 + $0x34] sm:$0xf]
    %v196 = vld [vmem:[#allocation8 + $0x38] sm:$0xf]
    %v197 = vld [vmem:[#allocation8 + $0x3c] sm:$0xf]
    %v198 = vld [vmem:[#allocation8 + $0x40] sm:$0xf]
    %v199 = vld [vmem:[#allocation8 + $0x44] sm:$0xf]
    %v200 = vld [vmem:[#allocation8 + $0x48] sm:$0xf]
    %v201 = vld [vmem:[#allocation8 + $0x4c] sm:$0xf]
    %v202 = vld [vmem:[#allocation8 + $0x50] sm:$0xf]
    %v203 = vld [vmem:[#allocation8 + $0x54] sm:$0xf]
    %v204 = vld [vmem:[#allocation8 + $0x58] sm:$0xf]
    %v205 = vld [vmem:[#allocation8 + $0x5c] sm:$0xf]
    %v206 = vld [vmem:[#allocation8 + $0x60] sm:$0xf]
    %v207 = vld [vmem:[#allocation8 + $0x64] sm:$0xf]
    %v208 = vld [vmem:[#allocation8 + $0x68] sm:$0xf]
    %v209 = vld [vmem:[#allocation8 + $0x6c] sm:$0xf]
    %v210 = vld [vmem:[#allocation8 + $0x70] sm:$0xf]
    %v211 = vld [vmem:[#allocation8 + $0x74] sm:$0xf]
    %v212 = vld [vmem:[#allocation8 + $0x78] sm:$0xf]
    %v213 = vld [vmem:[#allocation8 + $0x7c] sm:$0xf]
    %v214 = vperm.slane %v80, 0
    %v216 = vunpack.c.l.b16 %v181
    %v217 = vunpack.c.h.b16 %v181
    %v218 = vpack.c.b16 %v216, %v216
    %v219 = vpack.c.b16 %v217, %v217
    %v254 = vunpack.c.l.b16 %v182
    %v255 = vunpack.c.l.b16 %v183
    %v256 = vunpack.c.l.b16 %v184
    %v257 = vunpack.c.l.b16 %v185
    %v258 = vunpack.c.l.b16 %v186
    %v259 = vunpack.c.l.b16 %v187
    %v260 = vunpack.c.l.b16 %v188
    %v261 = vunpack.c.l.b16 %v189
    %v262 = vunpack.c.l.b16 %v190
    %v263 = vunpack.c.l.b16 %v191
    %v264 = vunpack.c.l.b16 %v192
    %v265 = vunpack.c.l.b16 %v193
    %v266 = vunpack.c.l.b16 %v194
    %v267 = vunpack.c.l.b16 %v195
    %v268 = vunpack.c.l.b16 %v196
    %v269 = vunpack.c.l.b16 %v197
    %v270 = vunpack.c.l.b16 %v198
    %v271 = vunpack.c.l.b16 %v199
    %v272 = vunpack.c.l.b16 %v200
    %v273 = vunpack.c.l.b16 %v201
    %v274 = vunpack.c.l.b16 %v202
    %v275 = vunpack.c.l.b16 %v203
    %v276 = vunpack.c.l.b16 %v204
    %v277 = vunpack.c.l.b16 %v205
    %v278 = vunpack.c.l.b16 %v206
    %v279 = vunpack.c.l.b16 %v207
    %v280 = vunpack.c.l.b16 %v208
    %v281 = vunpack.c.l.b16 %v209
    %v282 = vunpack.c.l.b16 %v210
    %v283 = vunpack.c.l.b16 %v211
    %v284 = vunpack.c.l.b16 %v212
    %v285 = vunpack.c.l.b16 %v213
    %v286 = vpack.c.b16 %v255, %v254
    %v287 = vpack.c.b16 %v257, %v256
    %v288 = vpack.c.b16 %v259, %v258
    %v289 = vpack.c.b16 %v261, %v260
    %v290 = vpack.c.b16 %v263, %v262
    %v291 = vpack.c.b16 %v265, %v264
    %v292 = vpack.c.b16 %v267, %v266
    %v293 = vpack.c.b16 %v269, %v268
    %v294 = vpack.c.b16 %v271, %v270
    %v295 = vpack.c.b16 %v273, %v272
    %v296 = vpack.c.b16 %v275, %v274
    %v297 = vpack.c.b16 %v277, %v276
    %v298 = vpack.c.b16 %v279, %v278
    %v299 = vpack.c.b16 %v281, %v280
    %v300 = vpack.c.b16 %v283, %v282
    %v301 = vpack.c.b16 %v285, %v284
    %318 = vmatpush.bf16.msra.mxu0 %v293
    %319 = vmatpush.bf16.msra.mxu0 %v292
    %320 = vmatpush.bf16.msra.mxu0 %v291
    %321 = vmatpush.bf16.msra.mxu0 %v290
    %322 = vmatpush.bf16.msra.mxu0 %v289
    %323 = vmatpush.bf16.msra.mxu0 %v288
    %324 = vmatpush.bf16.msra.mxu0 %v287
    %325 = vmatpush.bf16.msra.mxu0 %v286
    %326 = vmatmul.bf16.gmra.mxu0 %v218
    %v327 = vpop.f32.mrf.mxu0
    %v328 = vadd.f32 %v214, %v327
    %v329 = vpop.f32.mrf.mxu0
    %330 = vdwg.mxu0
    %331 = vmatpush.bf16.msra.mxu0 %v301
    %332 = vmatpush.bf16.msra.mxu0 %v300
    %333 = vmatpush.bf16.msra.mxu0 %v299
    %334 = vmatpush.bf16.msra.mxu0 %v298
    %335 = vmatpush.bf16.msra.mxu0 %v297
    %336 = vmatpush.bf16.msra.mxu0 %v296
    %337 = vmatpush.bf16.msra.mxu0 %v295
    %338 = vmatpush.bf16.msra.mxu0 %v294
    %339 = vmatmul.bf16.gmra.mxu0 %v219
    %v340 = vpop.f32.mrf.mxu0
    %v341 = vadd.f32 %v328, %v340
    %v342 = vpop.f32.mrf.mxu0
    %343 = vdwg.mxu0
    %344 = vadd.xlane.f32.xlu0 %v341
    %v345 = vpop.xlane.xlu0 %344
    %v346 = vmul.f32 %v345, %v152
    %v347 = vsub.f32 %v341, %v346
    %v348 = vmul.f32 %v347, %v347
    %349 = vadd.xlane.f32.xlu0 %v348
    %v350 = vpop.xlane.xlu0 %349
    %v351 = vmul.f32 %v350, %v152
    %v352 = vadd.f32 %v351, 1e-05
    %v353 = vrsqrt.pop %v352
    %v354 = vmul.f32 %v353, %v352
    %v355 = vmul.f32 %v354, %v353
    %v356 = vmul.f32 0.5, %v355
    %v357 = vsub.f32 1.5, %v356
    %v358 = vmul.f32 %v353, %v357
    %vm359 = vweird.f32 %v352
    %vm360 = vweird.f32 %v353
    %vm361 = vmor %vm359, %vm360
    %v362 = vsel %vm361, %v353, %v358
    %v363 = vmul.f32 %v347, %v362
    %v364 = vperm.slane %v81, 0
    %v365 = vmul.f32 %v363, %v364
    %v366 = vperm.slane %v82, 0
    %v367 = vadd.f32 %v365, %v366
    %v368 = vmax.f32 %v367, 0.0
    %v369 = vperm.slane %v83, 0
    %v370 = vmul.f32 %v368, %v369
    %371 = vadd.xlane.f32.xlu0 %v370
    %v372 = vpop.xlane.xlu0 %371
    %v373 = vperm.slane %v84, 0
    %v374 = vadd.f32 %v372, %v373
    %375 = vst [vmem:[#allocation11] sm:$0xff] %v374
    // Predicated region
    $region34: #{tpu_custom_call.1} parent=1 // pred_check
      _
    $region35: #{tpu_custom_call.1} parent=1 // pred_check_branch
      %377 = sbr.rel (0) target = $region37
    $region36: #{tpu_custom_call.1} parent=1 // pred_region
      %379 = vsyncadd [#allocation5], 0
      %s381 = sshll.u32 [#allocation11], 4
      %s382 = int_to_ptr.vmem [resolvable:$true] %s381
      %s383 = sshll.u32 %s4, 4
      %s384 = int_to_ptr.hbm [resolvable:$true] %s383
      %386 = dma.vmem_to_hbm [thread:$0]  %s382, 128, %s384, [#allocation5]
    $region37: #{tpu_custom_call.1} parent=1 // pred_fallthru
      _
    // Predicated region
    $region38: #{tpu_custom_call.1} parent=1 // pred_check
      _
    $region39: #{tpu_custom_call.1} parent=1 // pred_check_branch
      %388 = sbr.rel (0) target = $region41
    $region40: #{tpu_custom_call.1} parent=1 // pred_region
      %390 = dma.done [#allocation5], 128
    $region41: #{tpu_custom_call.1} parent=1 // pred_fallthru
      _
    %391 = vsyncpa [#allocation4], 1
    %392 = vsyncpa [#allocation7], 1
    %393 = vsyncpa [#allocation10], 1
    %394 = vsyncpa [#allocation5], 1

</llo_original>
